<compile_context>
chip_gen: v7x
topology: tpu7x:2x2x1
jax: 0.10.0
libtpu: 0.0.40
codegen_flags: <defaults>
</compile_context>

<pallas_src>
import math

import jax
import jax.numpy as jnp
from jax.experimental import pallas as pl
from jax.experimental.pallas import tpu as pltpu


def _round_up(v, m):
    return (v + m - 1) // m * m


def _vmem_budgets():
    """Per-generation (A-stream budget, vmem_limit_bytes)."""
    cap = 64 * 1024 * 1024
    try:
        info = pltpu.get_tpu_info()
        cap = int(getattr(info, "vmem_capacity_bytes", cap)) or cap
    except Exception:
        pass
    stream = max(16 * 1024 * 1024, int(cap * 0.35))        # double-buffered A stream
    limit = max(stream + 16 * 1024 * 1024, int(cap * 0.75))
    limit = min(limit, cap - 4 * 1024 * 1024)
    return stream, limit


def _pick_tiles(n_pad, stream_budget):
    # Row tile: largest power-of-two divisor of n_pad, capped at 1024 and at
    # n_pad // 2 so that v7x's two TensorCores both get row tiles.
    tm = 8
    for cand in (1024, 512, 256, 128, 64, 32, 16, 8):
        if n_pad % cand == 0 and (cand * 2 <= n_pad or cand == 8):
            tm = cand
            break
    # Column tile: largest divisor of n_pad that is a multiple of 128 whose
    # double-buffered bf16 stream fits the per-generation VMEM budget.
    tk = 128
    for cand in range(n_pad, 127, -128):
        if n_pad % cand == 0 and 2 * tm * cand * 2 <= stream_budget:
            tk = cand
            break
    return tm, tk


# ----------------------- kernel 1: GCN attention score ---------------------- #

def _gcn_score_kernel(a_ref, hd_ref, dinv_ref, b_ref, o_ref, acc_ref):
    k = pl.program_id(1)

    @pl.when(k == 0)
    def _():
        acc_ref[...] = jnp.zeros_like(acc_ref)

    # Stream the (tm, tk) bf16 adjacency tile through the MXU, f32 accumulate.
    acc_ref[...] += jnp.dot(a_ref[...], hd_ref[...],
                            preferred_element_type=jnp.float32)

    @pl.when(k == pl.num_programs(1) - 1)
    def _():
        # Fused left normalization (D^-1/2 row scale) + bias.
        o_ref[...] = dinv_ref[...] * acc_ref[...] + b_ref[0]


def gcn_score(a_pad_bf16, hd_pad_bf16, dinv_pad, b):
    n_pad = a_pad_bf16.shape[0]
    stream_budget, vmem_limit = _vmem_budgets()
    tm, tk = _pick_tiles(n_pad, stream_budget)
    return pl.pallas_call(
        _gcn_score_kernel,
        out_shape=jax.ShapeDtypeStruct((n_pad, 1), jnp.float32),
        grid_spec=pltpu.PrefetchScalarGridSpec(
            num_scalar_prefetch=0,
            grid=(n_pad // tm, n_pad // tk),
            in_specs=[
                pl.BlockSpec((tm, tk), lambda i, k: (i, k)),        # (A+I) tile, bf16 stream
                pl.BlockSpec((tk, 1), lambda i, k: (k, 0)),         # D^-1/2 h (bf16)
                pl.BlockSpec((tm, 1), lambda i, k: (i, 0)),         # D^-1/2 row scale (f32)
                pl.BlockSpec(memory_space=pltpu.MemorySpace.SMEM),  # bias scalar
            ],
            out_specs=pl.BlockSpec((tm, 1), lambda i, k: (i, 0)),
            scratch_shapes=[pltpu.VMEM((tm, 1), jnp.float32)],
        ),
        compiler_params=pltpu.CompilerParams(
            dimension_semantics=("parallel", "arbitrary"),
            vmem_limit_bytes=vmem_limit,
        ),
    )(a_pad_bf16, hd_pad_bf16, dinv_pad, b)


def _gcn_attention_score(x, edge_index, w, b):
    """score = D^-1/2 (A+I) D^-1/2 (X W) + b, with the dense normalized
    adjacency streamed by the Pallas kernel."""
    n, _ = x.shape
    n_pad = max(_round_up(n, 128), 128)

    row = edge_index[1].astype(jnp.int32)
    col = edge_index[0].astype(jnp.int32)
    diag = jnp.arange(n, dtype=jnp.int32)
    rows_all = jnp.concatenate([row, diag])
    cols_all = jnp.concatenate([col, diag])

    # (A + I) built once, already padded and in bf16: a single O(N^2) HBM pass.
    a_pad = jnp.zeros((n_pad, n_pad), jnp.bfloat16).at[rows_all, cols_all].add(1.0)

    # Exact f32 degrees from the edge list (O(E)); +1 for the self loop.
    deg = jnp.zeros((n,), jnp.float32).at[row].add(1.0) + 1.0
    dinv = jax.lax.rsqrt(deg)
    dinv_pad = jnp.zeros((n_pad, 1), jnp.float32).at[:n, 0].set(dinv)

    # h = X @ W once (tiny C x 1 matvec), pre-scaled by D^-1/2, cast to bf16.
    h = x.astype(jnp.float32) @ w.astype(jnp.float32)                 # (n, 1)
    hd_pad = jnp.zeros((n_pad, 1), jnp.bfloat16).at[:n, :].set(
        (dinv[:, None] * h).astype(jnp.bfloat16))

    score_pad = gcn_score(a_pad, hd_pad, dinv_pad, b.astype(jnp.float32))
    return score_pad[:n, 0]                                           # (N,)


# --------------------- kernel 2: fused gather + tanh gate ------------------- #

_GATE_ROWS = 8                 # rows gathered per grid step (sublane-dense store)
_GATE_JAX_BYTES = 64 * 1024    # below this, plain XLA gather wins


def _gate_kernel(perm_ref, g_ref, x_hbm, o_ref, xbuf, sems):
    tr = o_ref.shape[0]
    base = pl.program_id(0) * tr
    # Issue all row gathers (overlapped DMAs), then wait, gate, store one block.
    for r in range(tr):
        idx = perm_ref[base + r]
        pltpu.make_async_copy(x_hbm.at[pl.ds(idx, 1), :],
                              xbuf.at[pl.ds(r, 1), :],
                              sems.at[r]).start()
    for r in range(tr):
        pltpu.make_async_copy(x_hbm.at[pl.ds(0, 1), :],
                              xbuf.at[pl.ds(r, 1), :],
                              sems.at[r]).wait()
    o_ref[...] = (xbuf[...].astype(jnp.float32) * g_ref[...]).astype(o_ref.dtype)


def gate_gather(x, gate, perm, tr=_GATE_ROWS):
    """x[perm] * gate[:, None], with the row gather done by in-kernel DMAs."""
    n, c = x.shape
    k = perm.shape[0]
    k_pad = _round_up(k, tr)
    perm_pad = jnp.zeros((k_pad,), jnp.int32).at[:k].set(perm.astype(jnp.int32))
    g_pad = jnp.zeros((k_pad, 1), jnp.float32).at[:k, 0].set(gate.astype(jnp.float32))

    out = pl.pallas_call(
        _gate_kernel,
        out_shape=jax.ShapeDtypeStruct((k_pad, c), x.dtype),
        grid_spec=pltpu.PrefetchScalarGridSpec(
            num_scalar_prefetch=1,                                # perm -> SMEM
            grid=(k_pad // tr,),
            in_specs=[
                pl.BlockSpec((tr, 1), lambda i, p: (i, 0)),       # tanh(score[perm]) tile
                pl.BlockSpec(memory_space=pl.ANY),                # x stays in HBM
            ],
            out_specs=pl.BlockSpec((tr, c), lambda i, p: (i, 0)),
            scratch_shapes=[
                pltpu.VMEM((tr, c), x.dtype),
                pltpu.SemaphoreType.DMA((tr,)),
            ],
        ),
        compiler_params=pltpu.CompilerParams(
            dimension_semantics=("arbitrary",)),
    )(perm_pad, g_pad, x)
    return out[:k]


# ------------------------------- SAGPool glue ------------------------------- #

def sag_pool(x, edge_index, w, b, ratio=0.5, edge_attr=None, batch=None):
    n, c = x.shape
    if batch is None:
        batch = jnp.zeros((n,), jnp.int32)

    # Attention scores via the Pallas streamed GCN mat-vec.
    # TODO(synk): for very large sparse graphs replace the dense O(N^2)
    # adjacency stream with a segment/scatter O(E) kernel.
    score = _gcn_attention_score(x, edge_index, w, b)                 # (N,)

    # topk node selection.
    # TODO(synk): global top-k only (batch assumed trivial); per-graph ratio
    # top-k needs segment-wise sorting which has no clean Pallas equivalent.
    k = int(math.ceil(ratio * n))
    _, perm = jax.lax.top_k(score, k)
    perm = perm.astype(jnp.int32)

    # Fused gather + gate: x_out = x[perm] * tanh(score[perm])[:, None].
    gate = jnp.tanh(score[perm])
    if k * c * x.dtype.itemsize < _GATE_JAX_BYTES:
        x_out = x[perm] * gate[:, None]          # tiny: XLA fused gather wins
    else:
        x_out = gate_gather(x, gate, perm)
    batch_out = batch[perm]

    # filter_adj: keep edges whose endpoints were both selected, remap indices.
    # TODO(synk): JAX needs static shapes, so dropped edges are padded with -1
    # instead of being compacted like torch_geometric's filter_adj.
    new_idx = jnp.full((n,), -1, jnp.int32).at[perm].set(
        jnp.arange(k, dtype=jnp.int32))
    row, col = edge_index[0], edge_index[1]
    keep = (new_idx[row] >= 0) & (new_idx[col] >= 0)
    edge_index_out = jnp.stack([jnp.where(keep, new_idx[row], -1),
                                jnp.where(keep, new_idx[col], -1)])
    if edge_attr is None:
        edge_attr_out = None
    else:
        keep_b = keep.reshape((-1,) + (1,) * (edge_attr.ndim - 1))
        edge_attr_out = jnp.where(keep_b, edge_attr, 0)

    return x_out, edge_index_out, edge_attr_out, batch_out, perm


# ------------------------------ JAX references ------------------------------ #

def _gcn_score_reference(x, edge_index, w, b):
    n = x.shape[0]
    adj = jnp.zeros((n, n), jnp.float32).at[edge_index[1], edge_index[0]].add(1.0)
    adj = adj + jnp.eye(n, dtype=jnp.float32)
    deg = adj.sum(axis=1)
    dinv = jax.lax.rsqrt(deg)
    a_norm = dinv[:, None] * adj * dinv[None, :]
    return (a_norm @ (x.astype(jnp.float32) @ w.astype(jnp.float32)) + b)[:, 0]


# ---------------------------------- main ------------------------------------ #

if __name__ == "__main__":
    key = jax.random.PRNGKey(0)
    k_x, k_w, k_x2, k_w2, k_e = jax.random.split(key, 5)

    # ---------- small demo (matches the module's tiny usage) ----------
    N, C = 16, 8
    ratio = 0.5
    x = jax.random.normal(k_x, (N, C), jnp.float32)

    # Bidirectional ring graph: (2, 2N) int32 edge index.
    src = jnp.arange(N, dtype=jnp.int32)
    dst = (src + 1) % N
    edge_index = jnp.concatenate(
        [jnp.stack([src, dst]), jnp.stack([dst, src])], axis=1)

    # GCNConv(in_channels, 1): glorot-uniform weight (C, 1), zero bias.
    limit = math.sqrt(6.0 / (C + 1))
    w = jax.random.uniform(k_w, (C, 1), jnp.float32, -limit, limit)
    b = jnp.zeros((1,), jnp.float32)

    x_out, ei_out, ea_out, batch_out, perm = sag_pool(
        x, edge_index, w, b, ratio=ratio)
    jax.block_until_ready(x_out)
    jax.block_until_ready(ei_out)
    jax.block_until_ready(perm)

    # ---------- larger smoke test: exercises the Pallas gather/gate path ----------
    N2, C2, E2 = 300, 128, 1200
    x2 = jax.random.normal(k_x2, (N2, C2), jnp.float32)
    ei2 = jax.random.randint(k_e, (2, E2), 0, N2, dtype=jnp.int32)
    limit2 = math.sqrt(6.0 / (C2 + 1))
    w2 = jax.random.uniform(k_w2, (C2, 1), jnp.float32, -limit2, limit2)
    b2 = jnp.full((1,), 0.1, jnp.float32)

    score_pl = _gcn_attention_score(x2, ei2, w2, b2)
    score_ref = _gcn_score_reference(x2, ei2, w2, b2)
    assert jnp.allclose(score_pl, score_ref, rtol=5e-2, atol=5e-2), \
        "GCN attention score mismatch vs f32 reference"

    k2 = int(math.ceil(0.5 * N2))
    _, perm2 = jax.lax.top_k(score_pl, k2)
    perm2 = perm2.astype(jnp.int32)
    gate2 = jnp.tanh(score_pl[perm2])
    xg_pl = gate_gather(x2, gate2, perm2)
    xg_ref = x2[perm2] * gate2[:, None]
    assert jnp.allclose(xg_pl, xg_ref, rtol=1e-5, atol=1e-5), \
        "gather/gate kernel mismatch vs reference"

    x_out2, ei_out2, _, _, perm2b = sag_pool(x2, ei2, w2, b2, ratio=0.5)
    jax.block_until_ready(x_out2)
    jax.block_until_ready(ei_out2)
    jax.block_until_ready(perm2b)

    print("KERNEL_OK")
</pallas_src>

<mosaic_0001>
module attributes {stable_mosaic.version = 11 : i64} {
  func.func @_gcn_score_kernel(%arg0: i32, %arg1: i32, %arg2: memref<64x128xbf16, #tpu.memory_space<vmem>>, %arg3: memref<128x1xbf16, #tpu.memory_space<vmem>>, %arg4: memref<64x1xf32, #tpu.memory_space<vmem>>, %arg5: memref<1xf32, #tpu.memory_space<smem>>, %arg6: memref<64x1xf32, #tpu.memory_space<vmem>>, %arg7: memref<64x1xf32, #tpu.memory_space<vmem>>) attributes {dimension_semantics = [#tpu.dimension_semantics<parallel>, #tpu.dimension_semantics<arbitrary>], iteration_bounds = array<i64: 2, 1>, scalar_prefetch = 0 : i64, scratch_operands = 1 : i64, tpu.core_type = #tpu.core_type<tc>, window_params = [{transform_indices = @transform_0, window_bounds = array<i64: 64, 128>}, {transform_indices = @transform_1, window_bounds = array<i64: 128, 1>}, {transform_indices = @transform_2, window_bounds = array<i64: 64, 1>}, {transform_indices = @transform_3, window_bounds = array<i64: 1>}, {transform_indices = @transform_4, window_bounds = array<i64: 64, 1>}]} {
    %c0_i32 = arith.constant 0 : i32
    %0 = arith.cmpi eq, %arg1, %c0_i32 : i32
    %1 = arith.extui %0 : i1 to i32
    %c0_i32_0 = arith.constant 0 : i32
    %2 = arith.cmpi ne, %1, %c0_i32_0 : i32
    scf.if %2 {
      %cst_10 = arith.constant 0.000000e+00 : f32
      %12 = vector.broadcast %cst_10 : f32 to vector<64x1xf32>
      %c0_11 = arith.constant 0 : index
      %c0_12 = arith.constant 0 : index
      %13 = vector.load %arg7[%c0_11, %c0_12] : memref<64x1xf32, #tpu.memory_space<vmem>>, vector<64x1xf32>
      tpu.vector_store %arg7[%c0_11, %c0_12], %12 {strides = array<i32>} : memref<64x1xf32, #tpu.memory_space<vmem>>, vector<64x1xf32>,
    } else {
    }
    %c0 = arith.constant 0 : index
    %c0_1 = arith.constant 0 : index
    %3 = vector.load %arg7[%c0, %c0_1] : memref<64x1xf32, #tpu.memory_space<vmem>>, vector<64x1xf32>
    %c0_2 = arith.constant 0 : index
    %c0_3 = arith.constant 0 : index
    %4 = vector.load %arg2[%c0_2, %c0_3] : memref<64x128xbf16, #tpu.memory_space<vmem>>, vector<64x128xbf16>
    %c0_4 = arith.constant 0 : index
    %c0_5 = arith.constant 0 : index
    %5 = vector.load %arg3[%c0_4, %c0_5] : memref<128x1xbf16, #tpu.memory_space<vmem>>, vector<128x1xbf16>
    %cst = arith.constant dense<0.000000e+00> : vector<64x1xf32>
    %6 = tpu.matmul %4, %5, %cst {dimension_numbers = #tpu.dot_dimension_numbers<[1], [0], [0], [1], [0, 0, 1, 1], [], []>} : vector<64x128xbf16>, vector<128x1xbf16>, vector<64x1xf32> -> vector<64x1xf32>
    %7 = arith.addf %3, %6 : vector<64x1xf32>
    %c0_6 = arith.constant 0 : index
    %c0_7 = arith.constant 0 : index
    %8 = vector.load %arg7[%c0_6, %c0_7] : memref<64x1xf32, #tpu.memory_space<vmem>>, vector<64x1xf32>
    tpu.vector_store %arg7[%c0_6, %c0_7], %7 {strides = array<i32>} : memref<64x1xf32, #tpu.memory_space<vmem>>, vector<64x1xf32>,
    %c0_i32_8 = arith.constant 0 : i32
    %9 = arith.cmpi eq, %arg1, %c0_i32_8 : i32
    %10 = arith.extui %9 : i1 to i32
    %c0_i32_9 = arith.constant 0 : i32
    %11 = arith.cmpi ne, %10, %c0_i32_9 : i32
    scf.if %11 {
      %c0_10 = arith.constant 0 : index
      %c0_11 = arith.constant 0 : index
      %12 = vector.load %arg4[%c0_10, %c0_11] : memref<64x1xf32, #tpu.memory_space<vmem>>, vector<64x1xf32>
      %c0_12 = arith.constant 0 : index
      %c0_13 = arith.constant 0 : index
      %13 = vector.load %arg7[%c0_12, %c0_13] : memref<64x1xf32, #tpu.memory_space<vmem>>, vector<64x1xf32>
      %14 = arith.mulf %12, %13 : vector<64x1xf32>
      %c0_14 = arith.constant 0 : index
      %15 = memref.load %arg5[%c0_14] : memref<1xf32, #tpu.memory_space<smem>>
      %16 = vector.broadcast %15 : f32 to vector<64x1xf32>
      %17 = arith.addf %14, %16 : vector<64x1xf32>
      %c0_15 = arith.constant 0 : index
      %c0_16 = arith.constant 0 : index
      %18 = vector.load %arg6[%c0_15, %c0_16] : memref<64x1xf32, #tpu.memory_space<vmem>>, vector<64x1xf32>
      tpu.vector_store %arg6[%c0_15, %c0_16], %17 {strides = array<i32>} : memref<64x1xf32, #tpu.memory_space<vmem>>, vector<64x1xf32>,
    } else {
    }
    return
  }
  func.func @transform_0(%arg0: i32, %arg1: i32) -> (i32, i32) {
    %c0_i32 = arith.constant 0 : i32
    return %arg0, %arg1 : i32, i32
  }
  func.func @transform_1(%arg0: i32, %arg1: i32) -> (i32, i32) {
    %c0_i32 = arith.constant 0 : i32
    %c0_i32_0 = arith.constant 0 : i32
    return %arg1, %c0_i32 : i32, i32
  }
  func.func @transform_2(%arg0: i32, %arg1: i32) -> (i32, i32) {
    %c0_i32 = arith.constant 0 : i32
    %c0_i32_0 = arith.constant 0 : i32
    return %arg0, %c0_i32 : i32, i32
  }
  func.func @transform_3(%arg0: i32, %arg1: i32) -> i32 {
    %c0_i32 = arith.constant 0 : i32
    %c0_i32_0 = arith.constant 0 : i32
    return %c0_i32 : i32
  }
  func.func @transform_4(%arg0: i32, %arg1: i32) -> (i32, i32) {
    %c0_i32 = arith.constant 0 : i32
    %c0_i32_0 = arith.constant 0 : i32
    return %arg0, %c0_i32 : i32, i32
  }
}

</mosaic_0001>

<llo_original>
// kernel: tpu_custom_call.1
$region0: #{tpu_custom_call.1}
  #allocation0 [shape = 'u32[]', space=smem, size = 0x4, offset = 0x4, fixed_abs, tag = 'smem constant byte address 0x4 - core index']
  #allocation1 [shape = 'u32[144,128]{1,0:T(1,128)}', space=vmem, size = 0x12000, scoped, tag = 'internal scratch']
  #allocation2 [shape = 'f32[64,1]{1,0:T(8,128)}', space=vmem, size = 0x8000, scoped, tag = 'scratch operand']
  #allocation3 [shape = 'f32[1]{0:T(128)S(6)}', space=smem, size = 0x200, scoped, tag = 'scoped memory for tpu_custom_call.1']
  %s0 = inlined_call_operand.vmem [shape: bf16[128,128], index: 0, kind: input, shape index: {}]
  %s1 = inlined_call_operand.vmem [shape: bf16[128,1], index: 1, kind: input, shape index: {}]
  %s2 = inlined_call_operand.vmem [shape: f32[128,1], index: 2, kind: input, shape index: {}]
  %s3 = inlined_call_operand.<no memory space> [shape: f32[1], index: 3, kind: input, shape index: {}]
  %s4 = inlined_call_operand.vmem [shape: f32[128,1], index: 4, kind: output, shape index: {}]
  %s5 = sld [smem:[#allocation0]]
  $region57: #{tpu_custom_call.1} parent=0
    _
  %s7 = ssub.s32 1, %s5
  %s8 = scalar_select 0, %s7, %s5
  %9 = sst [smem:[#allocation3]] %s3
  loop: start=0, step=1, limit=4
  $region2: #{tpu_custom_call.1} parent=0 // loop_pre_header
    _
  $region3: #{tpu_custom_call.1} parent=0 // loop_header
    %s11 = sphi 0, %s15
    %p12 = scmp.ge.s32.totalorder %s11, 4
    %s18 = sphi 0, %s30
    %s19 = sphi 0, %s26
    %s20 = sphi 0, %s18
    %s21 = sphi 0, %s19
    %s22 = sphi 0, %s20
    %s23 = sphi 0, %s21
    %s35 = sphi 0, %s37
    %s38 = sphi 0, %s35
    %s39 = sphi 0, %s38
    %s55 = sphi 0, %s39
    %s61 = sphi 0, %s63
    %s64 = sphi 0, %s61
    %s65 = sphi 0, %s64
    %s81 = sphi 0, %s65
    %s87 = sphi 0, %s89
    %s90 = sphi 0, %s87
    %s91 = sphi 0, %s90
    %s107 = sphi 0, %s91
    %s111 = sphi 0, %s111
    %s113 = sphi 0, %s111
    %s114 = sphi 0, %s113
    %s128 = sphi 0, %s114
    %s134 = sphi 0, %s136
    %s137 = sphi 0, %s134
    %s138 = sphi 0, %s137
    %s154 = sphi 0, %s138
  $region4: #{tpu_custom_call.1} parent=0 // loop_header_branch
    %14 = sbr.rel (%p12) target = $region8
  $region5: #{tpu_custom_call.1} parent=0 // loop_body
    %s16 = ssub.s32 %s11, 1
    %s17 = ssub.s32 %s11, 2
    %s24 = sadd.s32 1, %s19
    %p25 = scmp.ge.s32.totalorder %s24, 1
    %s26 = scalar_select %p25, 0, %s24
    %s27 = sadd.s32 1, %s18
    %s28 = scalar_select %p25, %s27, %s18
    %p29 = scmp.ge.s32.totalorder %s28, 2
    %s30 = scalar_select %p29, 0, %s28
    %s31 = ssub.s32 %s18, %s30
    %s32 = ssub.s32 %s19, %s26
    %s33 = sor.u32 %s31, %s32
    %p34 = scmp.eq.s32.totalorder %s33, 0
    %s36 = sadd.s32 %s35, 1
    %s37 = scalar_select %p34, %s35, %s36
    %p40 = pneg %p34
    %p41 = scmp.eq.s32.totalorder %s11, 1
    %p42 = por %p40, %p41
    %p43 = scmp.ne.s32.totalorder %s35, %s38
    %p44 = scmp.eq.s32.totalorder %s11, 0
    %p45 = por %p43, %p44
    %p46 = scmp.ne.s32.totalorder %s35, %s38
    %p47 = scmp.eq.s32.totalorder %s16, 1
    %p48 = por %p46, %p47
    %p49 = scmp.ne.s32.totalorder %s38, %s39
    %p50 = scmp.eq.s32.totalorder %s16, 0
    %p51 = por %p49, %p50
    %p52 = scmp.ne.s32.totalorder %s38, %s39
    %p53 = scmp.eq.s32.totalorder %s17, 1
    %p54 = por %p52, %p53
    %p56 = scmp.ne.s32.totalorder %s39, %s55
    %p57 = scmp.eq.s32.totalorder %s17, 0
    %p58 = por %p56, %p57
    %s59 = ssub.s32 %s19, %s26
    %p60 = scmp.eq.s32.totalorder %s59, 0
    %s62 = sadd.s32 %s61, 1
    %s63 = scalar_select %p60, %s61, %s62
    %p66 = pneg %p60
    %p67 = scmp.eq.s32.totalorder %s11, 1
    %p68 = por %p66, %p67
    %p69 = scmp.ne.s32.totalorder %s61, %s64
    %p70 = scmp.eq.s32.totalorder %s11, 0
    %p71 = por %p69, %p70
    %p72 = scmp.ne.s32.totalorder %s61, %s64
    %p73 = scmp.eq.s32.totalorder %s16, 1
    %p74 = por %p72, %p73
    %p75 = scmp.ne.s32.totalorder %s64, %s65
    %p76 = scmp.eq.s32.totalorder %s16, 0
    %p77 = por %p75, %p76
    %p78 = scmp.ne.s32.totalorder %s64, %s65
    %p79 = scmp.eq.s32.totalorder %s17, 1
    %p80 = por %p78, %p79
    %p82 = scmp.ne.s32.totalorder %s65, %s81
    %p83 = scmp.eq.s32.totalorder %s17, 0
    %p84 = por %p82, %p83
    %s85 = ssub.s32 %s18, %s30
    %p86 = scmp.eq.s32.totalorder %s85, 0
    %s88 = sadd.s32 %s87, 1
    %s89 = scalar_select %p86, %s87, %s88
    %p92 = pneg %p86
    %p93 = scmp.eq.s32.totalorder %s11, 1
    %p94 = por %p92, %p93
    %p95 = scmp.ne.s32.totalorder %s87, %s90
    %p96 = scmp.eq.s32.totalorder %s11, 0
    %p97 = por %p95, %p96
    %p98 = scmp.ne.s32.totalorder %s87, %s90
    %p99 = scmp.eq.s32.totalorder %s16, 1
    %p100 = por %p98, %p99
    %p101 = scmp.ne.s32.totalorder %s90, %s91
    %p102 = scmp.eq.s32.totalorder %s16, 0
    %p103 = por %p101, %p102
    %p104 = scmp.ne.s32.totalorder %s90, %s91
    %p105 = scmp.eq.s32.totalorder %s17, 1
    %p106 = por %p104, %p105
    %p108 = scmp.ne.s32.totalorder %s91, %s107
    %p109 = scmp.eq.s32.totalorder %s17, 0
    %p110 = por %p108, %p109
    %s112 = sadd.s32 %s111, 1
    %p115 = scmp.eq.s32.totalorder %s11, 1
    %p116 = scmp.ne.s32.totalorder %s111, %s113
    %p117 = scmp.eq.s32.totalorder %s11, 0
    %p118 = por %p116, %p117
    %p119 = scmp.ne.s32.totalorder %s111, %s113
    %p120 = scmp.eq.s32.totalorder %s16, 1
    %p121 = por %p119, %p120
    %p122 = scmp.ne.s32.totalorder %s113, %s114
    %p123 = scmp.eq.s32.totalorder %s16, 0
    %p124 = por %p122, %p123
    %p125 = scmp.ne.s32.totalorder %s113, %s114
    %p126 = scmp.eq.s32.totalorder %s17, 1
    %p127 = por %p125, %p126
    %p129 = scmp.ne.s32.totalorder %s114, %s128
    %p130 = scmp.eq.s32.totalorder %s17, 0
    %p131 = por %p129, %p130
    %s132 = ssub.s32 %s18, %s30
    %p133 = scmp.eq.s32.totalorder %s132, 0
    %s135 = sadd.s32 %s134, 1
    %s136 = scalar_select %p133, %s134, %s135
    %p139 = pneg %p133
    %p140 = scmp.eq.s32.totalorder %s11, 1
    %p141 = por %p139, %p140
    %p142 = scmp.ne.s32.totalorder %s134, %s137
    %p143 = scmp.eq.s32.totalorder %s11, 0
    %p144 = por %p142, %p143
    %p145 = scmp.ne.s32.totalorder %s134, %s137
    %p146 = scmp.eq.s32.totalorder %s16, 1
    %p147 = por %p145, %p146
    %p148 = scmp.ne.s32.totalorder %s137, %s138
    %p149 = scmp.eq.s32.totalorder %s16, 0
    %p150 = por %p148, %p149
    %p151 = scmp.ne.s32.totalorder %s137, %s138
    %p152 = scmp.eq.s32.totalorder %s17, 1
    %p153 = por %p151, %p152
    %p155 = scmp.ne.s32.totalorder %s138, %s154
    %p156 = scmp.eq.s32.totalorder %s17, 0
    %p157 = por %p155, %p156
    %p158 = scmp.le.s32.totalorder 1, %s11
    %p159 = scmp.lt.s32.totalorder %s11, 3
    %p160 = pnand %p158, %p159
    %p161 = pneg %p160
    // Predicated region
    $region9: #{tpu_custom_call.1} parent=5 // pred_check
      _
    $region10: #{tpu_custom_call.1} parent=5 // pred_check_branch
      %163 = sbr.rel (%p160) target = $region12
    $region11: #{tpu_custom_call.1} parent=5 // pred_region
      %s164 = ssub.s32 %s11, 1
      // Predicated region
      $region13: #{tpu_custom_call.1} parent=11 // pred_check
        %p165 = pneg %p77
      $region14: #{tpu_custom_call.1} parent=11 // pred_check_branch
        %167 = sbr.rel (%p165) target = $region16
      $region15: #{tpu_custom_call.1} parent=11 // pred_region
        %s168 = smul.u32 16, %s21
        %p169 = scmp.lt.s32.totalorder %s168, 15
        %s170 = scalar_select %p169, %s168, 15
        %s171 = smul.addr %s170, 4
        %s172 = scalar_lea.vmem %s1, %s171
        %s173 = smul.u32 16, %s21
      $region16: #{tpu_custom_call.1} parent=11 // pred_fallthru
        _
      // Predicated region
      $region17: #{tpu_custom_call.1} parent=11 // pred_check
        %p174 = pneg %p124
      $region18: #{tpu_custom_call.1} parent=11 // pred_check_branch
        %176 = sbr.rel (%p174) target = $region20
      $region19: #{tpu_custom_call.1} parent=11 // pred_region
        _
      $region20: #{tpu_custom_call.1} parent=11 // pred_fallthru
        _
    $region12: #{tpu_custom_call.1} parent=5 // pred_fallthru
      _
    %p177 = scmp.lt.s32.totalorder %s11, 2
    // Predicated region
    $region21: #{tpu_custom_call.1} parent=5 // pred_check
      %p178 = pneg %p177
    $region22: #{tpu_custom_call.1} parent=5 // pred_check_branch
      %180 = sbr.rel (%p178) target = $region24
    $region23: #{tpu_custom_call.1} parent=5 // pred_region
      // Predicated region
      $region25: #{tpu_custom_call.1} parent=23 // pred_check
        %p181 = pneg %p45
      $region26: #{tpu_custom_call.1} parent=23 // pred_check_branch
        %183 = sbr.rel (%p181) target = $region28
      $region27: #{tpu_custom_call.1} parent=23 // pred_region
        %s184 = smul.u32 8, %s18
        %p185 = scmp.lt.s32.totalorder %s184, 15
        %s186 = scalar_select %p185, %s184, 15
        %p187 = scmp.lt.s32.totalorder %s19, 0
        %s188 = scalar_select %p187, %s19, 0
        %s189 = sadd.s32 %s188, %s186
        %s190 = smul.addr %s189, 4
        %s191 = scalar_lea.vmem %s0, %s190
        %s192 = smul.u32 8, %s18
      $region28: #{tpu_custom_call.1} parent=23 // pred_fallthru
        _
      // Predicated region
      $region29: #{tpu_custom_call.1} parent=23 // pred_check
        %p193 = pneg %p97
      $region30: #{tpu_custom_call.1} parent=23 // pred_check_branch
        %195 = sbr.rel (%p193) target = $region32
      $region31: #{tpu_custom_call.1} parent=23 // pred_region
        %s196 = smul.u32 8, %s18
        %p197 = scmp.lt.s32.totalorder %s196, 15
        %s198 = scalar_select %p197, %s196, 15
        %s199 = smul.addr %s198, 8
        %s200 = scalar_lea.vmem %s2, %s199
        %s201 = smul.u32 8, %s18
      $region32: #{tpu_custom_call.1} parent=23 // pred_fallthru
        _
    $region24: #{tpu_custom_call.1} parent=5 // pred_fallthru
      _
    %p202 = scmp.le.s32.totalorder 1, %s11
    %p203 = scmp.lt.s32.totalorder %s11, 3
    %p204 = pnand %p202, %p203
    %p205 = pneg %p204
    // Predicated region
    $region33: #{tpu_custom_call.1} parent=5 // pred_check
      _
    $region34: #{tpu_custom_call.1} parent=5 // pred_check_branch
      %207 = sbr.rel (%p204) target = $region36
    $region35: #{tpu_custom_call.1} parent=5 // pred_region
      %s208 = ssub.s32 %s11, 1
      %s209 = smul.u32 8, %s20
      %p210 = scmp.lt.s32.totalorder %s209, 15
      %s211 = scalar_select %p210, %s209, 15
      %p212 = scmp.lt.s32.totalorder %s21, 0
      %s213 = scalar_select %p212, %s21, 0
      %s214 = sadd.s32 %s213, %s211
      %s215 = smul.addr %s214, 4
      %s216 = scalar_lea.vmem %s0, %s215
      %p217 = pneg %p51
      %p218 = pneg %p48
      %s219 = smul.u32 16, %s21
      %p220 = scmp.lt.s32.totalorder %s219, 15
      %s221 = scalar_select %p220, %s219, 15
      %s222 = smul.addr %s221, 4
      %s223 = scalar_lea.vmem %s1, %s222
      %p224 = pneg %p77
      %p225 = pneg %p74
      %s226 = smul.u32 8, %s20
      %p227 = scmp.lt.s32.totalorder %s226, 15
      %s228 = scalar_select %p227, %s226, 15
      %s229 = smul.addr %s228, 8
      %s230 = scalar_lea.vmem %s2, %s229
      %p231 = pneg %p103
      %p232 = pneg %p100
      %p233 = pneg %p124
      %p234 = pneg %p121
      %p235 = pneg %p150
      %p236 = pneg %p147
      %s237 = smul.u32 8, %s20
      %p238 = scmp.lt.s32.totalorder %s237, 15
      %s239 = scalar_select %p238, %s237, 15
      %s240 = smul.addr %s239, 8
      %s241 = scalar_lea.vmem %s4, %s240
      %s242 = smul.u32 8, %s20
      %p243 = scmp.lt.s32.totalorder %s242, 15
      %s244 = scalar_select %p243, %s242, 15
      %p245 = scmp.lt.s32.totalorder %s21, 0
      %s246 = scalar_select %p245, %s21, 0
      %s247 = sadd.s32 %s246, %s244
      %s248 = smul.addr %s247, 4
      %s249 = scalar_lea.vmem %s0, %s248
      %s250 = smul.u32 8, %s20
      %s251 = smul.u32 16, %s21
      %p252 = scmp.lt.s32.totalorder %s251, 15
      %s253 = scalar_select %p252, %s251, 15
      %s254 = smul.addr %s253, 4
      %s255 = scalar_lea.vmem %s1, %s254
      %s256 = smul.u32 16, %s21
      %s257 = smul.u32 8, %s20
      %p258 = scmp.lt.s32.totalorder %s257, 15
      %s259 = scalar_select %p258, %s257, 15
      %s260 = smul.addr %s259, 8
      %s261 = scalar_lea.vmem %s2, %s260
      %s262 = smul.u32 8, %s20
      %s263 = smul.u32 8, %s20
      %p264 = scmp.lt.s32.totalorder %s263, 15
      %s265 = scalar_select %p264, %s263, 15
      %s266 = smul.addr %s265, 8
      %s267 = scalar_lea.vmem %s4, %s266
      %s268 = smul.u32 8, %s20
      %p270 = scmp.eq.s32.totalorder %s21, 0
      // Predicated region
      $region37: #{tpu_custom_call.1} parent=35 // pred_check
        %p271 = pneg %p270
      $region38: #{tpu_custom_call.1} parent=35 // pred_check_branch
        %273 = sbr.rel (%p271) target = $region40
      $region39: #{tpu_custom_call.1} parent=35 // pred_region
        %vm274 = vcmask 7168
        %275 = vst.msk [vmem:[#allocation2] sm:$0xff] %vm274, 0.0
        %276 = vst.msk [vmem:[#allocation2 + $0x8] sm:$0xff] %vm274, 0.0
        %277 = vst.msk [vmem:[#allocation2 + $0x10] sm:$0xff] %vm274, 0.0
        %278 = vst.msk [vmem:[#allocation2 + $0x18] sm:$0xff] %vm274, 0.0
        %279 = vst.msk [vmem:[#allocation2 + $0x20] sm:$0xff] %vm274, 0.0
        %280 = vst.msk [vmem:[#allocation2 + $0x28] sm:$0xff] %vm274, 0.0
        %281 = vst.msk [vmem:[#allocation2 + $0x30] sm:$0xff] %vm274, 0.0
        %282 = vst.msk [vmem:[#allocation2 + $0x38] sm:$0xff] %vm274, 0.0
      $region40: #{tpu_custom_call.1} parent=35 // pred_fallthru
        _
      %v283 = vld [vmem:[#allocation2] sm:$0xff]
      %v284 = vld [vmem:[#allocation2 + $0x8] sm:$0xff]
      %v285 = vld [vmem:[#allocation2 + $0x10] sm:$0xff]
      %v286 = vld [vmem:[#allocation2 + $0x18] sm:$0xff]
      %v287 = vld [vmem:[#allocation2 + $0x20] sm:$0xff]
      %v288 = vld [vmem:[#allocation2 + $0x28] sm:$0xff]
      %v289 = vld [vmem:[#allocation2 + $0x30] sm:$0xff]
      %v290 = vld [vmem:[#allocation2 + $0x38] sm:$0xff]
      %v291 = vld [vmem:[%s249] sm:$0xf]
      %v292 = vld [vmem:[%s249 + $0x4] sm:$0xf]
      %v293 = vld [vmem:[%s249 + $0x8] sm:$0xf]
      %v294 = vld [vmem:[%s249 + $0xc] sm:$0xf]
      %v295 = vld [vmem:[%s249 + $0x10] sm:$0xf]
      %v296 = vld [vmem:[%s249 + $0x14] sm:$0xf]
      %v297 = vld [vmem:[%s249 + $0x18] sm:$0xf]
      %v298 = vld [vmem:[%s249 + $0x1c] sm:$0xf]
      %v299 = vld [vmem:[%s255] sm:$0xf]
      %v300 = vld [vmem:[%s255 + $0x4] sm:$0xf]
      %v301 = vld [vmem:[%s255 + $0x8] sm:$0xf]
      %v302 = vld [vmem:[%s255 + $0xc] sm:$0xf]
      %v303 = vld [vmem:[%s255 + $0x10] sm:$0xf]
      %v304 = vld [vmem:[%s255 + $0x14] sm:$0xf]
      %v305 = vld [vmem:[%s255 + $0x18] sm:$0xf]
      %v306 = vld [vmem:[%s255 + $0x1c] sm:$0xf]
      %v307 = vld [vmem:[%s255 + $0x20] sm:$0xf]
      %v308 = vld [vmem:[%s255 + $0x24] sm:$0xf]
      %v309 = vld [vmem:[%s255 + $0x28] sm:$0xf]
      %v310 = vld [vmem:[%s255 + $0x2c] sm:$0xf]
      %v311 = vld [vmem:[%s255 + $0x30] sm:$0xf]
      %v312 = vld [vmem:[%s255 + $0x34] sm:$0xf]
      %v313 = vld [vmem:[%s255 + $0x38] sm:$0xf]
      %v314 = vld [vmem:[%s255 + $0x3c] sm:$0xf]
      %v323 = vunpack.c.l.b16 %v291
      %v324 = vunpack.c.l.b16 %v292
      %v325 = vunpack.c.l.b16 %v293
      %v326 = vunpack.c.l.b16 %v294
      %v327 = vunpack.c.l.b16 %v295
      %v328 = vunpack.c.l.b16 %v296
      %v329 = vunpack.c.l.b16 %v297
      %v330 = vunpack.c.l.b16 %v298
      %v331 = vpack.c.b16 %v324, %v323
      %v332 = vpack.c.b16 %v326, %v325
      %v333 = vpack.c.b16 %v328, %v327
      %v334 = vpack.c.b16 %v330, %v329
      %v355 = vunpack.c.l.b16 %v299
      %v356 = vunpack.c.l.b16 %v300
      %v357 = vunpack.c.l.b16 %v301
      %v358 = vunpack.c.l.b16 %v302
      %v359 = vunpack.c.l.b16 %v303
      %v360 = vunpack.c.l.b16 %v304
      %v361 = vunpack.c.l.b16 %v305
      %v362 = vunpack.c.l.b16 %v306
      %v363 = vunpack.c.l.b16 %v307
      %v364 = vunpack.c.l.b16 %v308
      %v365 = vunpack.c.l.b16 %v309
      %v366 = vunpack.c.l.b16 %v310
      %v367 = vunpack.c.l.b16 %v311
      %v368 = vunpack.c.l.b16 %v312
      %v369 = vunpack.c.l.b16 %v313
      %v370 = vunpack.c.l.b16 %v314
      %v371 = vpack.c.b16 %v356, %v355
      %v372 = vpack.c.b16 %v358, %v357
      %v373 = vpack.c.b16 %v360, %v359
      %v374 = vpack.c.b16 %v362, %v361
      %v375 = vpack.c.b16 %v364, %v363
      %v376 = vpack.c.b16 %v366, %v365
      %v377 = vpack.c.b16 %v368, %v367
      %v378 = vpack.c.b16 %v370, %v369
      %387 = vmatprep.subr.bf16.mxu0 0
      %388 = vmatpush1.bf16.msra.mxu0 %v371
      %389 = vmatprep.subr.bf16.mxu0 0
      %390 = vmatpush1.bf16.msra.mxu0 %v372
      %391 = vmatprep.subr.bf16.mxu0 0
      %392 = vmatpush1.bf16.msra.mxu0 %v373
      %393 = vmatprep.subr.bf16.mxu0 0
      %394 = vmatpush1.bf16.msra.mxu0 %v374
      %395 = vmatprep.subr.bf16.mxu0 0
      %396 = vmatpush1.bf16.msra.mxu0 %v375
      %397 = vmatprep.subr.bf16.mxu0 0
      %398 = vmatpush1.bf16.msra.mxu0 %v376
      %399 = vmatprep.subr.bf16.mxu0 0
      %400 = vmatpush1.bf16.msra.mxu0 %v377
      %401 = vmatprep.subr.bf16.mxu0 0
      %402 = vmatpush1.bf16.msra.mxu0 %v378
      %403 = vmatprep.subr.bf16.mxu0 0
      %404 = vmatpush1.bf16.msra.mxu0 0
      %405 = vmatprep.subr.bf16.mxu0 0
      %406 = vmatpush1.bf16.msra.mxu0 0
      %407 = vmatprep.subr.bf16.mxu0 0
      %408 = vmatpush1.bf16.msra.mxu0 0
      %409 = vmatprep.subr.bf16.mxu0 0
      %410 = vmatpush1.bf16.msra.mxu0 0
      %411 = vmatprep.subr.bf16.mxu0 0
      %412 = vmatpush1.bf16.msra.mxu0 0
      %413 = vmatprep.subr.bf16.mxu0 0
      %414 = vmatpush1.bf16.msra.mxu0 0
      %415 = vmatprep.subr.bf16.mxu0 0
      %416 = vmatpush1.bf16.msra.mxu0 0
      %417 = vmatprep.subr.bf16.mxu0 0
      %418 = vmatpush1.bf16.msra.mxu0 0
      %419 = vmatprep.mubr.bf16.mxu0 0
      %420 = vmatmul.mubr.bf16.gmra.mrb[0].mxu0 %v331
      %v421 = vpop.f32.mrb[0].mxu0
      %v422 = vadd.f32 0.0, %v421
      %v423 = vpop.f32.mrb[0].mxu0
      %v424 = vpop.f32.mrb[0].mxu0
      %v425 = vadd.f32 0.0, %v424
      %v426 = vpop.f32.mrb[0].mxu0
      %427 = vmatprep.mubr.bf16.mxu0 0
      %428 = vmatmul.mubr.bf16.gmra.mrb[0].mxu0 %v332
      %v429 = vpop.f32.mrb[0].mxu0
      %v430 = vadd.f32 0.0, %v429
      %v431 = vpop.f32.mrb[0].mxu0
      %v432 = vpop.f32.mrb[0].mxu0
      %v433 = vadd.f32 0.0, %v432
      %v434 = vpop.f32.mrb[0].mxu0
      %435 = vmatprep.mubr.bf16.mxu0 0
      %436 = vmatmul.mubr.bf16.gmra.mrb[0].mxu0 %v333
      %v437 = vpop.f32.mrb[0].mxu0
      %v438 = vadd.f32 0.0, %v437
      %v439 = vpop.f32.mrb[0].mxu0
      %v440 = vpop.f32.mrb[0].mxu0
      %v441 = vadd.f32 0.0, %v440
      %v442 = vpop.f32.mrb[0].mxu0
      %443 = vmatprep.mubr.bf16.mxu0 0
      %444 = vmatmul.mubr.bf16.gmra.mrb[0].mxu0 %v334
      %v445 = vpop.f32.mrb[0].mxu0
      %v446 = vadd.f32 0.0, %v445
      %v447 = vpop.f32.mrb[0].mxu0
      %v448 = vpop.f32.mrb[0].mxu0
      %v449 = vadd.f32 0.0, %v448
      %v450 = vpop.f32.mrb[0].mxu0
      %451 = vdwg.mxu0
      %v452 = vadd.f32 %v283, %v422
      %v453 = vadd.f32 %v284, %v425
      %v454 = vadd.f32 %v285, %v430
      %v455 = vadd.f32 %v286, %v433
      %v456 = vadd.f32 %v287, %v438
      %v457 = vadd.f32 %v288, %v441
      %v458 = vadd.f32 %v289, %v446
      %v459 = vadd.f32 %v290, %v449
      %vm460 = vcmask 7168
      %461 = vst.msk [vmem:[#allocation2] sm:$0xff] %vm460, %v452
      %462 = vst.msk [vmem:[#allocation2 + $0x8] sm:$0xff] %vm460, %v453
      %463 = vst.msk [vmem:[#allocation2 + $0x10] sm:$0xff] %vm460, %v454
      %464 = vst.msk [vmem:[#allocation2 + $0x18] sm:$0xff] %vm460, %v455
      %465 = vst.msk [vmem:[#allocation2 + $0x20] sm:$0xff] %vm460, %v456
      %466 = vst.msk [vmem:[#allocation2 + $0x28] sm:$0xff] %vm460, %v457
      %467 = vst.msk [vmem:[#allocation2 + $0x30] sm:$0xff] %vm460, %v458
      %468 = vst.msk [vmem:[#allocation2 + $0x38] sm:$0xff] %vm460, %v459
      // Predicated region
      $region41: #{tpu_custom_call.1} parent=35 // pred_check
        %p469 = pneg %p270
      $region42: #{tpu_custom_call.1} parent=35 // pred_check_branch
        %471 = sbr.rel (%p469) target = $region44
      $region43: #{tpu_custom_call.1} parent=35 // pred_region
        %v472 = vld [vmem:[%s261] sm:$0xff]
        %v473 = vld [vmem:[%s261 + $0x8] sm:$0xff]
        %v474 = vld [vmem:[%s261 + $0x10] sm:$0xff]
        %v475 = vld [vmem:[%s261 + $0x18] sm:$0xff]
        %v476 = vld [vmem:[%s261 + $0x20] sm:$0xff]
        %v477 = vld [vmem:[%s261 + $0x28] sm:$0xff]
        %v478 = vld [vmem:[%s261 + $0x30] sm:$0xff]
        %v479 = vld [vmem:[%s261 + $0x38] sm:$0xff]
        %v480 = vld [vmem:[#allocation2] sm:$0xff]
        %v481 = vld [vmem:[#allocation2 + $0x8] sm:$0xff]
        %v482 = vld [vmem:[#allocation2 + $0x10] sm:$0xff]
        %v483 = vld [vmem:[#allocation2 + $0x18] sm:$0xff]
        %v484 = vld [vmem:[#allocation2 + $0x20] sm:$0xff]
        %v485 = vld [vmem:[#allocation2 + $0x28] sm:$0xff]
        %v486 = vld [vmem:[#allocation2 + $0x30] sm:$0xff]
        %v487 = vld [vmem:[#allocation2 + $0x38] sm:$0xff]
        %v488 = vmul.f32 %v472, %v480
        %v489 = vmul.f32 %v473, %v481
        %v490 = vmul.f32 %v474, %v482
        %v491 = vmul.f32 %v475, %v483
        %v492 = vmul.f32 %v476, %v484
        %v493 = vmul.f32 %v477, %v485
        %v494 = vmul.f32 %v478, %v486
        %v495 = vmul.f32 %v479, %v487
        %s496 = sld [smem:[#allocation3]]
        %v497 = vstv %s496
        %v498 = vadd.f32 %v488, %v497
        %v499 = vadd.f32 %v489, %v497
        %v500 = vadd.f32 %v490, %v497
        %v501 = vadd.f32 %v491, %v497
        %v502 = vadd.f32 %v492, %v497
        %v503 = vadd.f32 %v493, %v497
        %v504 = vadd.f32 %v494, %v497
        %v505 = vadd.f32 %v495, %v497
        %506 = vst.msk [vmem:[%s267] sm:$0xff] %vm460, %v498
        %507 = vst.msk [vmem:[%s267 + $0x8] sm:$0xff] %vm460, %v499
        %508 = vst.msk [vmem:[%s267 + $0x10] sm:$0xff] %vm460, %v500
        %509 = vst.msk [vmem:[%s267 + $0x18] sm:$0xff] %vm460, %v501
        %510 = vst.msk [vmem:[%s267 + $0x20] sm:$0xff] %vm460, %v502
        %511 = vst.msk [vmem:[%s267 + $0x28] sm:$0xff] %vm460, %v503
        %512 = vst.msk [vmem:[%s267 + $0x30] sm:$0xff] %vm460, %v504
        %513 = vst.msk [vmem:[%s267 + $0x38] sm:$0xff] %vm460, %v505
      $region44: #{tpu_custom_call.1} parent=35 // pred_fallthru
        _
      %s514 = smul.u32 8, %s20
      %p515 = scmp.lt.s32.totalorder %s514, 15
      %s516 = scalar_select %p515, %s514, 15
      %s517 = smul.addr %s516, 8
      %s518 = scalar_lea.vmem %s4, %s517
      // Predicated region
      $region45: #{tpu_custom_call.1} parent=35 // pred_check
        %p519 = pneg %p147
      $region46: #{tpu_custom_call.1} parent=35 // pred_check_branch
        %521 = sbr.rel (%p519) target = $region48
      $region47: #{tpu_custom_call.1} parent=35 // pred_region
        %s522 = smul.u32 8, %s20
      $region48: #{tpu_custom_call.1} parent=35 // pred_fallthru
        _
    $region36: #{tpu_custom_call.1} parent=5 // pred_fallthru
      _
    %p523 = scmp.le.s32.totalorder 2, %s11
    // Predicated region
    $region49: #{tpu_custom_call.1} parent=5 // pred_check
      %p524 = pneg %p523
    $region50: #{tpu_custom_call.1} parent=5 // pred_check_branch
      %526 = sbr.rel (%p524) target = $region52
    $region51: #{tpu_custom_call.1} parent=5 // pred_region
      %s527 = ssub.s32 %s11, 2
      // Predicated region
      $region53: #{tpu_custom_call.1} parent=51 // pred_check
        %p528 = pneg %p153
      $region54: #{tpu_custom_call.1} parent=51 // pred_check_branch
        %530 = sbr.rel (%p528) target = $region56
      $region55: #{tpu_custom_call.1} parent=51 // pred_region
        %s531 = smul.u32 8, %s22
        %p532 = scmp.lt.s32.totalorder %s531, 15
        %s533 = scalar_select %p532, %s531, 15
        %s534 = smul.addr %s533, 8
        %s535 = scalar_lea.vmem %s4, %s534
      $region56: #{tpu_custom_call.1} parent=51 // pred_fallthru
        _
    $region52: #{tpu_custom_call.1} parent=5 // pred_fallthru
      _
  $region6: #{tpu_custom_call.1} parent=0 // loop_footer
    %s15 = sadd.s32 1, %s11
  $region7: #{tpu_custom_call.1} parent=0 // loop_footer_branch
    %10 = sbr.rel target = $region3
  $region8: #{tpu_custom_call.1} parent=0 // loop_exit
    _

</llo_original>
